<compile_context>
chip_gen: v6e
topology: v6e:2x2x1
jax: 0.10.0
libtpu: 0.0.40
codegen_flags: <defaults>
</compile_context>

<pallas_src>
import functools

import jax
import jax.numpy as jnp
from jax import lax
from jax.experimental import pallas as pl
from jax.experimental.pallas import tpu as pltpu


def _multiconv_kernel(x_ref, w2_ref, g_ref, b_ref, lpos_ref, srcq_ref, out_ref,
                      *, L, K, NL, pad_l, eps):
    """Fused conv1d('same') + batchnorm(train) + relu + maxpool(3,2,1).

    x_ref    : (C_pad, NL_pad)   f32  activation slab (channels x batch*length)
    w2_ref   : (C_pad, K*C_pad)  f32/bf16  folded conv weight (k-major, c-minor)
    g_ref    : (C_pad, 1)        f32  BN gamma (zero on pad channels)
    b_ref    : (C_pad, 1)        f32  BN beta  (zero on pad channels)
    lpos_ref : (1, NL_pad)       i32  within-sample position per lane
                                      (sentinel 2*L on pad lanes)
    srcq_ref : (1, NLo_pad)      i32  source lane of each pooled output lane
                                      (sentinel -1 on pad lanes)
    out_ref  : (C_pad, NLo_pad)  f32  lane-dense pooled output slab
    """
    C_pad, NL_pad = x_ref.shape
    NLo_pad = out_ref.shape[1]

    x = x_ref[...]                         # (C_pad, NL_pad) f32
    lpos = lpos_ref[...]                   # (1, NL_pad) i32

    # ---- im2col: K statically-shifted views via XLU rolls + VPU masks ------
    # roll(x, sh)[j] == x[(j - sh) mod NL_pad]; with sh = (-s) mod NL_pad this
    # gives x[j + s]; the within-sample mask zeroes every lane whose source
    # would cross a sample boundary (pad lanes fail the mask automatically via
    # the 2*L sentinel), so no padded slab is ever materialized.
    cols = []
    for k in range(K):                     # K is small & static
        s = k - pad_l                      # tap offset inside each sample
        sh = (-s) % NL_pad
        shifted = pltpu.roll(x, sh, axis=1) if sh else x
        valid = (lpos >= -s) & (lpos < L - s)
        cols.append(jnp.where(valid, shifted, 0.0).astype(w2_ref.dtype))
    x2 = jnp.concatenate(cols, axis=0)     # (K*C_pad, NL_pad), aligned blocks

    # ---- Conv1d 'same': ONE MXU contraction for all taps + whole batch -----
    # Conv bias omitted: training-mode BN subtracts the per-channel mean
    # immediately after, so a per-channel bias has zero effect on the output.
    y = jnp.dot(w2_ref[...], x2, preferred_element_type=jnp.float32)

    # ---- BatchNorm1d (training stats): single pass, pad lanes masked -------
    in_real = lpos < L                     # (1, NL_pad): real (non-pad) lanes
    ym = jnp.where(in_real, y, 0.0)
    inv_n = 1.0 / NL
    mean = jnp.sum(ym, axis=1, keepdims=True) * inv_n               # (C_pad,1)
    var = jnp.maximum(
        jnp.sum(ym * ym, axis=1, keepdims=True) * inv_n - mean * mean, 0.0)
    scale = g_ref[...] * lax.rsqrt(var + eps)      # EUP rsqrt (free slot)
    shift = b_ref[...] - mean * scale
    y = jnp.maximum(y * scale + shift, 0.0)        # fused BN affine + ReLU

    # ---- MaxPool1d(kernel=3, stride=2, padding=1) ---------------------------
    # Zero stands in for PyTorch's -inf padding because y >= 0 after ReLU and
    # every window contains at least one real element.
    left = jnp.where(lpos >= 1, pltpu.roll(y, 1, axis=1), 0.0)           # y[l-1]
    right = jnp.where(lpos <= L - 2, pltpu.roll(y, NL_pad - 1, axis=1), 0.0)
    z = jnp.maximum(jnp.maximum(left, y), right)   # window max at every lane

    # stride-2 downsample onto the lane-dense output slab: one-hot selector
    # built from a single iota compare against the tiny (1, NLo_pad) source
    # table (no O(NL*NLo) HBM constant is shipped or stored).
    # TODO(synk): for large N*L replace the selector matmul with a strided
    # lane selection so the transient stays O(1) in batch (v7x 64 MiB VMEM).
    q = lax.broadcasted_iota(jnp.int32, (NL_pad, NLo_pad), 0)
    sel = (q == srcq_ref[...]).astype(jnp.float32)
    out_ref[...] = jnp.dot(z, sel, preferred_element_type=jnp.float32)


def _round_up(n, m):
    return ((n + m - 1) // m) * m


@functools.partial(jax.jit, static_argnames=("eps", "matmul_dtype"))
def multiconv_forward(x, w, b, gamma, beta, *, eps=1e-5,
                      matmul_dtype=jnp.float32):
    """x: (N, C, L) f32; w: (C_out, C_in, K) Conv1d weight; b/gamma/beta: (C,).

    matmul_dtype=jnp.bfloat16 feeds the MXU bf16 operands with f32
    accumulation (valid on v5e, v6e and v7x: only the matmul operands change;
    all elementwise / BN math stays f32).
    """
    del b  # conv bias is a mathematical no-op under training-mode BatchNorm.
    N, C, L = x.shape
    K = w.shape[-1]
    pad_l = (K - 1) // 2                 # 'same' padding, stride 1 (K odd here)
    Lout = (L + 2 * 1 - 3) // 2 + 1      # MaxPool1d(3, 2, padding=1)
    NL, NLo = N * L, N * Lout

    sub = 8 if jnp.dtype(matmul_dtype).itemsize == 4 else 16   # sublane granule
    C_pad = _round_up(C, sub)
    NL_pad = _round_up(NL, 128)          # lane-dense input slab
    NLo_pad = _round_up(NLo, 128)        # lane-dense output slab (no vst.msk)

    # Lane-dense activation slab (C_pad, NL_pad): channels on sublanes,
    # batch*length on lanes.  These layout ops fuse / const-fold under jit.
    # TODO(synk): fold this transpose (and the inverse on the output) into the
    # kernel via an N-gridded copy pass once the batch is large enough to tile.
    x_slab = jnp.transpose(x.astype(jnp.float32), (1, 0, 2)).reshape(C, NL)
    x_slab = jnp.pad(x_slab, ((0, C_pad - C), (0, NL_pad - NL)))

    # Folded conv weight (C_out_pad, K * C_in_pad), k-major / c_in-minor.
    w2 = jnp.transpose(w.astype(jnp.float32), (0, 2, 1))        # (C_out, K, C_in)
    w2 = jnp.pad(w2, ((0, C_pad - C), (0, 0), (0, C_pad - C)))
    w2 = w2.reshape(C_pad, K * C_pad).astype(matmul_dtype)

    g2 = jnp.pad(gamma.astype(jnp.float32), (0, C_pad - C)).reshape(C_pad, 1)
    be2 = jnp.pad(beta.astype(jnp.float32), (0, C_pad - C)).reshape(C_pad, 1)

    # Tiny i32 tables (one vreg row each; const-folded under jit):
    #   lpos_row: within-sample position per lane (2*L sentinel on pad lanes)
    #   srcq_row: source lane of each pooled output lane (-1 on pad lanes)
    j = jnp.arange(NL_pad, dtype=jnp.int32)
    lpos_row = jnp.where(j < NL, j % L, 2 * L).reshape(1, NL_pad)
    p = jnp.arange(NLo_pad, dtype=jnp.int32)
    srcq_row = jnp.where(p < NLo, (p // Lout) * L + 2 * (p % Lout),
                         -1).reshape(1, NLo_pad)

    kernel = functools.partial(_multiconv_kernel, L=L, K=K, NL=NL,
                               pad_l=pad_l, eps=eps)
    vmem = pl.BlockSpec(memory_space=pltpu.MemorySpace.VMEM)
    out_slab = pl.pallas_call(
        kernel,
        out_shape=jax.ShapeDtypeStruct((C_pad, NLo_pad), jnp.float32),
        in_specs=[vmem] * 6,
        out_specs=vmem,
    )(x_slab, w2, g2, be2, lpos_row, srcq_row)

    # Strip padding; back to PyTorch's (N, C, Lout) layout.
    return jnp.transpose(out_slab[:C, :NLo].reshape(C, N, Lout), (1, 0, 2))


def _reference(x, w, b, gamma, beta, eps=1e-5):
    """Pure-JAX reference of the PyTorch forward (training-mode BN)."""
    y = lax.conv_general_dilated(x, w, window_strides=(1,), padding="SAME",
                                 dimension_numbers=("NCH", "OIH", "NCH"))
    y = y + b.reshape(1, -1, 1)
    mean = y.mean(axis=(0, 2), keepdims=True)
    var = ((y - mean) ** 2).mean(axis=(0, 2), keepdims=True)
    y = (y - mean) / jnp.sqrt(var + eps)
    y = y * gamma.reshape(1, -1, 1) + beta.reshape(1, -1, 1)
    y = jnp.maximum(y, 0.0)
    y = lax.reduce_window(y, -jnp.inf, lax.max,
                          (1, 1, 3), (1, 1, 2),
                          [(0, 0), (0, 0), (1, 1)])
    return y


if __name__ == "__main__":
    # Module config: num_channels=7, kernel_size=5; small input (N=2, L=16).
    N, C, L, K = 2, 7, 16, 5
    key = jax.random.PRNGKey(0)
    kx, kw, kb, kg, kbe = jax.random.split(key, 5)

    x = jax.random.normal(kx, (N, C, L), dtype=jnp.float32)
    w = 0.1 * jax.random.normal(kw, (C, C, K), dtype=jnp.float32)   # (C_out, C_in, K)
    b = 0.1 * jax.random.normal(kb, (C,), dtype=jnp.float32)
    gamma = 1.0 + 0.1 * jax.random.normal(kg, (C,), dtype=jnp.float32)
    beta = 0.1 * jax.random.normal(kbe, (C,), dtype=jnp.float32)

    ref = jax.block_until_ready(_reference(x, w, b, gamma, beta))

    # f32 path (matches PyTorch numerics).
    out = jax.block_until_ready(multiconv_forward(x, w, b, gamma, beta))
    assert out.shape == ref.shape == (N, C, (L + 2 - 3) // 2 + 1)
    err = float(jnp.max(jnp.abs(out - ref)))
    assert jnp.allclose(out, ref, atol=1e-4, rtol=1e-4), err

    # bf16 MXU operands, f32 accumulation (valid on v5e/v6e/v7x).
    out_bf16 = jax.block_until_ready(
        multiconv_forward(x, w, b, gamma, beta, matmul_dtype=jnp.bfloat16))
    err_bf16 = float(jnp.max(jnp.abs(out_bf16 - ref)))
    assert jnp.allclose(out_bf16, ref, atol=5e-2, rtol=5e-2), err_bf16

    print("KERNEL_OK")
</pallas_src>

<mosaic_0001>
module attributes {stable_mosaic.version = 11 : i64} {
  func.func @_multiconv_kernel(%arg0: memref<8x128xf32, #tpu.memory_space<vmem>>, %arg1: memref<8x40xf32, #tpu.memory_space<vmem>>, %arg2: memref<8x1xf32, #tpu.memory_space<vmem>>, %arg3: memref<8x1xf32, #tpu.memory_space<vmem>>, %arg4: memref<1x128xi32, #tpu.memory_space<vmem>>, %arg5: memref<1x128xi32, #tpu.memory_space<vmem>>, %arg6: memref<8x128xf32, #tpu.memory_space<vmem>>) attributes {dimension_semantics = [], scalar_prefetch = 0 : i64, scratch_operands = 0 : i64, tpu.core_type = #tpu.core_type<tc>} {
    %c0 = arith.constant 0 : index
    %c0_0 = arith.constant 0 : index
    %0 = vector.load %arg0[%c0, %c0_0] : memref<8x128xf32, #tpu.memory_space<vmem>>, vector<8x128xf32>
    %c0_1 = arith.constant 0 : index
    %c0_2 = arith.constant 0 : index
    %1 = vector.load %arg4[%c0_1, %c0_2] : memref<1x128xi32, #tpu.memory_space<vmem>>, vector<1x128xi32>
    %c2_i32 = arith.constant 2 : i32
    %2 = tpu.dynamic_rotate %0 by %c2_i32 dim 1 : vector<8x128xf32>, i32 -> vector<8x128xf32>
    %c2_i32_3 = arith.constant 2 : i32
    %3 = vector.broadcast %c2_i32_3 : i32 to vector<1x128xi32>
    %4 = arith.cmpi sge, %1, %3 : vector<1x128xi32>
    %c18_i32 = arith.constant 18 : i32
    %5 = vector.broadcast %c18_i32 : i32 to vector<1x128xi32>
    %6 = arith.cmpi slt, %1, %5 : vector<1x128xi32>
    %7 = arith.andi %4, %6 : vector<1x128xi1>
    %cst = arith.constant 0.000000e+00 : f32
    %8 = vector.shape_cast %7 : vector<1x128xi1> to vector<1x128xi1>
    %9 = vector.broadcast %8 : vector<1x128xi1> to vector<8x128xi1>
    %10 = vector.broadcast %cst : f32 to vector<8x128xf32>
    %11 = arith.select %9, %2, %10 : vector<8x128xi1>, vector<8x128xf32>
    %c1_i32 = arith.constant 1 : i32
    %12 = tpu.dynamic_rotate %0 by %c1_i32 dim 1 : vector<8x128xf32>, i32 -> vector<8x128xf32>
    %c1_i32_4 = arith.constant 1 : i32
    %13 = vector.broadcast %c1_i32_4 : i32 to vector<1x128xi32>
    %14 = arith.cmpi sge, %1, %13 : vector<1x128xi32>
    %c17_i32 = arith.constant 17 : i32
    %15 = vector.broadcast %c17_i32 : i32 to vector<1x128xi32>
    %16 = arith.cmpi slt, %1, %15 : vector<1x128xi32>
    %17 = arith.andi %14, %16 : vector<1x128xi1>
    %cst_5 = arith.constant 0.000000e+00 : f32
    %18 = vector.shape_cast %17 : vector<1x128xi1> to vector<1x128xi1>
    %19 = vector.broadcast %18 : vector<1x128xi1> to vector<8x128xi1>
    %20 = vector.broadcast %cst_5 : f32 to vector<8x128xf32>
    %21 = arith.select %19, %12, %20 : vector<8x128xi1>, vector<8x128xf32>
    %c0_i32 = arith.constant 0 : i32
    %22 = vector.broadcast %c0_i32 : i32 to vector<1x128xi32>
    %23 = arith.cmpi sge, %1, %22 : vector<1x128xi32>
    %c16_i32 = arith.constant 16 : i32
    %24 = vector.broadcast %c16_i32 : i32 to vector<1x128xi32>
    %25 = arith.cmpi slt, %1, %24 : vector<1x128xi32>
    %26 = arith.andi %23, %25 : vector<1x128xi1>
    %cst_6 = arith.constant 0.000000e+00 : f32
    %27 = vector.shape_cast %26 : vector<1x128xi1> to vector<1x128xi1>
    %28 = vector.broadcast %27 : vector<1x128xi1> to vector<8x128xi1>
    %29 = vector.broadcast %cst_6 : f32 to vector<8x128xf32>
    %30 = arith.select %28, %0, %29 : vector<8x128xi1>, vector<8x128xf32>
    %c127_i32 = arith.constant 127 : i32
    %31 = tpu.dynamic_rotate %0 by %c127_i32 dim 1 : vector<8x128xf32>, i32 -> vector<8x128xf32>
    %c-1_i32 = arith.constant -1 : i32
    %32 = vector.broadcast %c-1_i32 : i32 to vector<1x128xi32>
    %33 = arith.cmpi sge, %1, %32 : vector<1x128xi32>
    %c15_i32 = arith.constant 15 : i32
    %34 = vector.broadcast %c15_i32 : i32 to vector<1x128xi32>
    %35 = arith.cmpi slt, %1, %34 : vector<1x128xi32>
    %36 = arith.andi %33, %35 : vector<1x128xi1>
    %cst_7 = arith.constant 0.000000e+00 : f32
    %37 = vector.shape_cast %36 : vector<1x128xi1> to vector<1x128xi1>
    %38 = vector.broadcast %37 : vector<1x128xi1> to vector<8x128xi1>
    %39 = vector.broadcast %cst_7 : f32 to vector<8x128xf32>
    %40 = arith.select %38, %31, %39 : vector<8x128xi1>, vector<8x128xf32>
    %c126_i32 = arith.constant 126 : i32
    %41 = tpu.dynamic_rotate %0 by %c126_i32 dim 1 : vector<8x128xf32>, i32 -> vector<8x128xf32>
    %c-2_i32 = arith.constant -2 : i32
    %42 = vector.broadcast %c-2_i32 : i32 to vector<1x128xi32>
    %43 = arith.cmpi sge, %1, %42 : vector<1x128xi32>
    %c14_i32 = arith.constant 14 : i32
    %44 = vector.broadcast %c14_i32 : i32 to vector<1x128xi32>
    %45 = arith.cmpi slt, %1, %44 : vector<1x128xi32>
    %46 = arith.andi %43, %45 : vector<1x128xi1>
    %cst_8 = arith.constant 0.000000e+00 : f32
    %47 = vector.shape_cast %46 : vector<1x128xi1> to vector<1x128xi1>
    %48 = vector.broadcast %47 : vector<1x128xi1> to vector<8x128xi1>
    %49 = vector.broadcast %cst_8 : f32 to vector<8x128xf32>
    %50 = arith.select %48, %41, %49 : vector<8x128xi1>, vector<8x128xf32>
    %51 = tpu.concatenate %11, %21, %30, %40, %50 in 0 : vector<8x128xf32>, vector<8x128xf32>, vector<8x128xf32>, vector<8x128xf32>, vector<8x128xf32> -> vector<40x128xf32>
    %c0_9 = arith.constant 0 : index
    %c0_10 = arith.constant 0 : index
    %52 = vector.load %arg1[%c0_9, %c0_10] : memref<8x40xf32, #tpu.memory_space<vmem>>, vector<8x40xf32>
    %cst_11 = arith.constant dense<0.000000e+00> : vector<8x128xf32>
    %53 = tpu.matmul %52, %51, %cst_11 {dimension_numbers = #tpu.dot_dimension_numbers<[1], [0], [0], [1], [0, 0, 1, 1], [], []>} : vector<8x40xf32>, vector<40x128xf32>, vector<8x128xf32> -> vector<8x128xf32>
    %c16_i32_12 = arith.constant 16 : i32
    %54 = vector.broadcast %c16_i32_12 : i32 to vector<1x128xi32>
    %55 = arith.cmpi slt, %1, %54 : vector<1x128xi32>
    %cst_13 = arith.constant 0.000000e+00 : f32
    %56 = vector.shape_cast %55 : vector<1x128xi1> to vector<1x128xi1>
    %57 = vector.broadcast %56 : vector<1x128xi1> to vector<8x128xi1>
    %58 = vector.broadcast %cst_13 : f32 to vector<8x128xf32>
    %59 = arith.select %57, %53, %58 : vector<8x128xi1>, vector<8x128xf32>
    %cst_14 = arith.constant dense<0.000000e+00> : vector<8xf32>
    %60 = vector.multi_reduction <add>, %59, %cst_14 [1] : vector<8x128xf32> to vector<8xf32>
    %61 = vector.shape_cast %60 : vector<8xf32> to vector<8x1xf32>
    %cst_15 = arith.constant 3.125000e-02 : f32
    %62 = vector.broadcast %cst_15 : f32 to vector<8x1xf32>
    %63 = arith.mulf %61, %62 : vector<8x1xf32>
    %64 = arith.mulf %59, %59 : vector<8x128xf32>
    %cst_16 = arith.constant dense<0.000000e+00> : vector<8xf32>
    %65 = vector.multi_reduction <add>, %64, %cst_16 [1] : vector<8x128xf32> to vector<8xf32>
    %66 = vector.shape_cast %65 : vector<8xf32> to vector<8x1xf32>
    %cst_17 = arith.constant 3.125000e-02 : f32
    %67 = vector.broadcast %cst_17 : f32 to vector<8x1xf32>
    %68 = arith.mulf %66, %67 : vector<8x1xf32>
    %69 = arith.mulf %63, %63 : vector<8x1xf32>
    %70 = arith.subf %68, %69 : vector<8x1xf32>
    %cst_18 = arith.constant 0.000000e+00 : f32
    %71 = vector.broadcast %cst_18 : f32 to vector<8x1xf32>
    %72 = arith.maximumf %70, %71 : vector<8x1xf32>
    %c0_19 = arith.constant 0 : index
    %c0_20 = arith.constant 0 : index
    %73 = vector.load %arg2[%c0_19, %c0_20] : memref<8x1xf32, #tpu.memory_space<vmem>>, vector<8x1xf32>
    %cst_21 = arith.constant 9.99999974E-6 : f32
    %74 = vector.broadcast %cst_21 : f32 to vector<8x1xf32>
    %75 = arith.addf %72, %74 : vector<8x1xf32>
    %76 = math.rsqrt %75 : vector<8x1xf32>
    %77 = arith.mulf %73, %76 : vector<8x1xf32>
    %c0_22 = arith.constant 0 : index
    %c0_23 = arith.constant 0 : index
    %78 = vector.load %arg3[%c0_22, %c0_23] : memref<8x1xf32, #tpu.memory_space<vmem>>, vector<8x1xf32>
    %79 = arith.mulf %63, %77 : vector<8x1xf32>
    %80 = arith.subf %78, %79 : vector<8x1xf32>
    %81 = vector.broadcast %77 : vector<8x1xf32> to vector<8x128xf32>
    %82 = arith.mulf %53, %81 : vector<8x128xf32>
    %83 = vector.broadcast %80 : vector<8x1xf32> to vector<8x128xf32>
    %84 = arith.addf %82, %83 : vector<8x128xf32>
    %cst_24 = arith.constant 0.000000e+00 : f32
    %85 = vector.broadcast %cst_24 : f32 to vector<8x128xf32>
    %86 = arith.maximumf %84, %85 : vector<8x128xf32>
    %c1_i32_25 = arith.constant 1 : i32
    %87 = vector.broadcast %c1_i32_25 : i32 to vector<1x128xi32>
    %88 = arith.cmpi sge, %1, %87 : vector<1x128xi32>
    %c1_i32_26 = arith.constant 1 : i32
    %89 = tpu.dynamic_rotate %86 by %c1_i32_26 dim 1 : vector<8x128xf32>, i32 -> vector<8x128xf32>
    %cst_27 = arith.constant 0.000000e+00 : f32
    %90 = vector.shape_cast %88 : vector<1x128xi1> to vector<1x128xi1>
    %91 = vector.broadcast %90 : vector<1x128xi1> to vector<8x128xi1>
    %92 = vector.broadcast %cst_27 : f32 to vector<8x128xf32>
    %93 = arith.select %91, %89, %92 : vector<8x128xi1>, vector<8x128xf32>
    %c14_i32_28 = arith.constant 14 : i32
    %94 = vector.broadcast %c14_i32_28 : i32 to vector<1x128xi32>
    %95 = arith.cmpi sle, %1, %94 : vector<1x128xi32>
    %c127_i32_29 = arith.constant 127 : i32
    %96 = tpu.dynamic_rotate %86 by %c127_i32_29 dim 1 : vector<8x128xf32>, i32 -> vector<8x128xf32>
    %cst_30 = arith.constant 0.000000e+00 : f32
    %97 = vector.shape_cast %95 : vector<1x128xi1> to vector<1x128xi1>
    %98 = vector.broadcast %97 : vector<1x128xi1> to vector<8x128xi1>
    %99 = vector.broadcast %cst_30 : f32 to vector<8x128xf32>
    %100 = arith.select %98, %96, %99 : vector<8x128xi1>, vector<8x128xf32>
    %101 = arith.maximumf %93, %86 : vector<8x128xf32>
    %102 = arith.maximumf %101, %100 : vector<8x128xf32>
    %103 = tpu.iota {dimensions = array<i32: 0>} : vector<128x128xi32>
    %c0_31 = arith.constant 0 : index
    %c0_32 = arith.constant 0 : index
    %104 = vector.load %arg5[%c0_31, %c0_32] : memref<1x128xi32, #tpu.memory_space<vmem>>, vector<1x128xi32>
    %105 = vector.broadcast %104 : vector<1x128xi32> to vector<128x128xi32>
    %106 = arith.cmpi eq, %103, %105 : vector<128x128xi32>
    %107 = arith.extui %106 : vector<128x128xi1> to vector<128x128xi32>
    %108 = arith.sitofp %107 : vector<128x128xi32> to vector<128x128xf32>
    %cst_33 = arith.constant dense<0.000000e+00> : vector<8x128xf32>
    %109 = tpu.matmul %102, %108, %cst_33 {dimension_numbers = #tpu.dot_dimension_numbers<[1], [0], [0], [1], [0, 0, 1, 1], [], []>} : vector<8x128xf32>, vector<128x128xf32>, vector<8x128xf32> -> vector<8x128xf32>
    %c0_34 = arith.constant 0 : index
    %c0_35 = arith.constant 0 : index
    %110 = vector.load %arg6[%c0_34, %c0_35] : memref<8x128xf32, #tpu.memory_space<vmem>>, vector<8x128xf32>
    tpu.vector_store %arg6[%c0_34, %c0_35], %109 {strides = array<i32>} : memref<8x128xf32, #tpu.memory_space<vmem>>, vector<8x128xf32>,
    return
  }
}

</mosaic_0001>

<llo_original>
// kernel: multiconv_forward.1
$region0: #{multiconv_forward.1}
  #allocation0 [shape = 'u32[]', space=smem, size = 0x4, offset = 0x4, fixed_abs, tag = 'smem constant byte address 0x4 - core index']
  #allocation1 [shape = 'u32[144,128]{1,0:T(1,128)}', space=vmem, size = 0x12000, scoped, tag = 'internal scratch']
  %s0 = inlined_call_operand.vmem [shape: f32[8,128], index: 0, kind: input, shape index: {}]
  %s1 = inlined_call_operand.vmem [shape: f32[8,40], index: 1, kind: input, shape index: {}]
  %s2 = inlined_call_operand.vmem [shape: f32[8,1], index: 2, kind: input, shape index: {}]
  %s3 = inlined_call_operand.vmem [shape: f32[8,1], index: 3, kind: input, shape index: {}]
  %s4 = inlined_call_operand.vmem [shape: s32[1,128], index: 4, kind: input, shape index: {}]
  %s5 = inlined_call_operand.vmem [shape: s32[1,128], index: 5, kind: input, shape index: {}]
  %s6 = inlined_call_operand.vmem [shape: f32[8,128], index: 6, kind: output, shape index: {}]
  %s7 = sld [smem:[#allocation0]]
  $region34: #{multiconv_forward.1} parent=0
    _
  %s9 = ssub.s32 1, %s7
  %s10 = scalar_select 0, %s9, %s7
  // Predicated region
  $region2: #{multiconv_forward.1} parent=0 // pred_check
    _
  $region3: #{multiconv_forward.1} parent=0 // pred_check_branch
    %12 = sbr.rel (0) target = $region5
  $region4: #{multiconv_forward.1} parent=0 // pred_region
    _
  $region5: #{multiconv_forward.1} parent=0 // pred_fallthru
    _
  // Predicated region
  $region6: #{multiconv_forward.1} parent=0 // pred_check
    _
  $region7: #{multiconv_forward.1} parent=0 // pred_check_branch
    %14 = sbr.rel (0) target = $region9
  $region8: #{multiconv_forward.1} parent=0 // pred_region
    _
  $region9: #{multiconv_forward.1} parent=0 // pred_fallthru
    _
  // Predicated region
  $region10: #{multiconv_forward.1} parent=0 // pred_check
    _
  $region11: #{multiconv_forward.1} parent=0 // pred_check_branch
    %16 = sbr.rel (0) target = $region13
  $region12: #{multiconv_forward.1} parent=0 // pred_region
    _
  $region13: #{multiconv_forward.1} parent=0 // pred_fallthru
    _
  // Predicated region
  $region14: #{multiconv_forward.1} parent=0 // pred_check
    _
  $region15: #{multiconv_forward.1} parent=0 // pred_check_branch
    %18 = sbr.rel (0) target = $region17
  $region16: #{multiconv_forward.1} parent=0 // pred_region
    _
  $region17: #{multiconv_forward.1} parent=0 // pred_fallthru
    _
  // Predicated region
  $region18: #{multiconv_forward.1} parent=0 // pred_check
    _
  $region19: #{multiconv_forward.1} parent=0 // pred_check_branch
    %20 = sbr.rel (0) target = $region21
  $region20: #{multiconv_forward.1} parent=0 // pred_region
    _
  $region21: #{multiconv_forward.1} parent=0 // pred_fallthru
    _
  // Predicated region
  $region22: #{multiconv_forward.1} parent=0 // pred_check
    _
  $region23: #{multiconv_forward.1} parent=0 // pred_check_branch
    %22 = sbr.rel (0) target = $region25
  $region24: #{multiconv_forward.1} parent=0 // pred_region
    _
  $region25: #{multiconv_forward.1} parent=0 // pred_fallthru
    _
  %v23 = vld [vmem:[%s0] sm:$0xff]
  %v24 = vld [vmem:[%s4] sm:$0x1]
  %25 = vrot.lane.b32.xlu0 %v23, 2
  %v26 = vpop.permute.xlu0 %25
  %vm27 = vcmp.ge.s32.totalorder %v24, 2
  %vm28 = vcmp.lt.s32.totalorder %v24, 18
  %vm29 = vmand %vm27, %vm28
  %v30 = vsel %vm29, 1, 0
  %v31 = vlaneseq
  %v32 = vshrl.u32 %v31, 7
  %v33 = vsub.s32 0, %v32
  %v34 = vrot.slane %v30, %v33
  %vm35 = vcmp.eq.s32.totalorder %v34, 1
  %v36 = vsel %vm35, %v26, 0.0
  %37 = vrot.lane.b32.xlu0 %v23, 1
  %v38 = vpop.permute.xlu0 %37
  %vm39 = vcmp.ge.s32.totalorder %v24, 1
  %vm40 = vcmp.lt.s32.totalorder %v24, 17
  %vm41 = vmand %vm39, %vm40
  %v42 = vsel %vm41, 1, 0
  %v43 = vlaneseq
  %v44 = vshrl.u32 %v43, 7
  %v45 = vsub.s32 0, %v44
  %v46 = vrot.slane %v42, %v45
  %vm47 = vcmp.eq.s32.totalorder %v46, 1
  %v48 = vsel %vm47, %v38, 0.0
  %vm49 = vcmp.ge.s32.totalorder %v24, 0
  %vm50 = vcmp.lt.s32.totalorder %v24, 16
  %vm51 = vmand %vm49, %vm50
  %v52 = vsel %vm51, 1, 0
  %v53 = vlaneseq
  %v54 = vshrl.u32 %v53, 7
  %v55 = vsub.s32 0, %v54
  %v56 = vrot.slane %v52, %v55
  %vm57 = vcmp.eq.s32.totalorder %v56, 1
  %v58 = vsel %vm57, %v23, 0.0
  %59 = vrot.lane.b32.xlu0 %v23, 127
  %v60 = vpop.permute.xlu0 %59
  %vm61 = vcmp.ge.s32.totalorder %v24, 4294967295
  %vm62 = vcmp.lt.s32.totalorder %v24, 15
  %vm63 = vmand %vm61, %vm62
  %v64 = vsel %vm63, 1, 0
  %v65 = vlaneseq
  %v66 = vshrl.u32 %v65, 7
  %v67 = vsub.s32 0, %v66
  %v68 = vrot.slane %v64, %v67
  %vm69 = vcmp.eq.s32.totalorder %v68, 1
  %v70 = vsel %vm69, %v60, 0.0
  %71 = vrot.lane.b32.xlu0 %v23, 126
  %v72 = vpop.permute.xlu0 %71
  %vm73 = vcmp.ge.s32.totalorder %v24, 4294967294
  %vm74 = vcmp.lt.s32.totalorder %v24, 14
  %vm75 = vmand %vm73, %vm74
  %v76 = vsel %vm75, 1, 0
  %v77 = vlaneseq
  %v78 = vshrl.u32 %v77, 7
  %v79 = vsub.s32 0, %v78
  %v80 = vrot.slane %v76, %v79
  %vm81 = vcmp.eq.s32.totalorder %v80, 1
  %v82 = vsel %vm81, %v72, 0.0
  %v83 = vld [vmem:[%s1] sm:$0xff]
  %vm84 = vcmask 326656
  %v86 = vsel %vm84, %v83, 0
  %88 = vmatprep.subr.mxu0 0.0
  %89 = vmatpush1.msra.mxu0 0.0
  %90 = vmatprep.subr.mxu0 0.0
  %91 = vmatpush1.msra.mxu0 0.0
  %92 = vmatprep.subr.mxu0 0.0
  %93 = vmatpush1.msra.mxu0 0.0
  %94 = vmatprep.subr.mxu0 0.0
  %95 = vmatpush1.msra.mxu0 0.0
  %96 = vmatprep.subr.mxu0 0.0
  %97 = vmatpush1.msra.mxu0 0.0
  %98 = vmatprep.subr.mxu0 0.0
  %99 = vmatpush1.msra.mxu0 0.0
  %100 = vmatprep.subr.mxu0 0.0
  %101 = vmatpush1.msra.mxu0 0.0
  %102 = vmatprep.subr.mxu0 0.0
  %103 = vmatpush1.msra.mxu0 0.0
  %104 = vmatprep.subr.mxu0 0.0
  %105 = vmatpush1.msra.mxu0 0.0
  %106 = vmatprep.subr.mxu0 0.0
  %107 = vmatpush1.msra.mxu0 0.0
  %108 = vmatprep.subr.mxu0 0.0
  %109 = vmatpush1.msra.mxu0 0.0
  %110 = vmatprep.subr.mxu0 0.0
  %111 = vmatpush1.msra.mxu0 %v82
  %112 = vmatprep.subr.mxu0 0.0
  %113 = vmatpush1.msra.mxu0 %v70
  %114 = vmatprep.subr.mxu0 0.0
  %115 = vmatpush1.msra.mxu0 %v58
  %116 = vmatprep.subr.mxu0 0.0
  %117 = vmatpush1.msra.mxu0 %v48
  %118 = vmatprep.subr.mxu0 0.0
  %119 = vmatpush1.msra.mxu0 %v36
  %120 = vmatprep.subr.mxu0 0.0
  %121 = vmatpush2.msra.mxu0 0.0
  %122 = vmatprep.subr.mxu0 0.0
  %123 = vmatpush2.msra.mxu0 0.0
  %124 = vmatprep.subr.mxu0 0.0
  %125 = vmatpush2.msra.mxu0 0.0
  %126 = vmatprep.subr.mxu0 0.0
  %127 = vmatpush2.msra.mxu0 0.0
  %128 = vmatprep.subr.mxu0 0.0
  %129 = vmatpush2.msra.mxu0 0.0
  %130 = vmatprep.subr.mxu0 0.0
  %131 = vmatpush2.msra.mxu0 0.0
  %132 = vmatprep.subr.mxu0 0.0
  %133 = vmatpush2.msra.mxu0 0.0
  %134 = vmatprep.subr.mxu0 0.0
  %135 = vmatpush2.msra.mxu0 0.0
  %136 = vmatprep.subr.mxu0 0.0
  %137 = vmatpush2.msra.mxu0 0.0
  %138 = vmatprep.subr.mxu0 0.0
  %139 = vmatpush2.msra.mxu0 0.0
  %140 = vmatprep.subr.mxu0 0.0
  %141 = vmatpush2.msra.mxu0 0.0
  %142 = vmatprep.subr.mxu0 0.0
  %143 = vmatpush2.msra.mxu0 0.0
  %144 = vmatprep.subr.mxu0 0.0
  %145 = vmatpush2.msra.mxu0 0.0
  %146 = vmatprep.subr.mxu0 0.0
  %147 = vmatpush2.msra.mxu0 0.0
  %148 = vmatprep.subr.mxu0 0.0
  %149 = vmatpush2.msra.mxu0 0.0
  %150 = vmatprep.subr.mxu0 0.0
  %151 = vmatpush2.msra.mxu0 0.0
  %152 = vmatprep.mubr.f32.mxu0 0.0
  %153 = vmatmul.mubr.f32.gmra.mxu0 %v86
  %v154 = vpop.f32.mrf.mxu0
  %v155 = vadd.f32 0.0, %v154
  %v156 = vpop.f32.mrf.mxu0
  %157 = vdwg.mxu0
  %v158 = vsel %vm50, 1, 0
  %v159 = vlaneseq
  %v160 = vshrl.u32 %v159, 7
  %v161 = vsub.s32 0, %v160
  %v162 = vrot.slane %v158, %v161
  %vm163 = vcmp.eq.s32.totalorder %v162, 1
  %v164 = vsel %vm163, %v155, 0.0
  %165 = vadd.xlane.f32.xlu0 %v164
  %v166 = vpop.xlane.xlu0 %165
  %v167 = vmul.f32 %v166, 0.03125
  %v168 = vmul.f32 %v164, %v164
  %169 = vadd.xlane.f32.xlu0 %v168
  %v170 = vpop.xlane.xlu0 %169
  %v171 = vmul.f32 %v170, 0.03125
  %v172 = vmul.f32 %v167, %v167
  %v173 = vsub.f32 %v171, %v172
  %v174 = vmax.f32 %v173, 0.0
  %v175 = vld [vmem:[%s2] sm:$0xff]
  %v176 = vadd.f32 %v174, 1e-05
  %v177 = vrsqrt.pop %v176
  %v178 = vmul.f32 %v175, %v177
  %v179 = vld [vmem:[%s3] sm:$0xff]
  %v180 = vmul.f32 %v167, %v178
  %v181 = vsub.f32 %v179, %v180
  %183 = vset.pattern.permute.xlu0 0
  %184 = vperm.xlu0 %183, %v178
  %v185 = vpop.permute.xlu0 %184
  %v187 = vmul.f32 %v155, %v185
  %189 = vset.pattern.permute.xlu0 0
  %190 = vperm.xlu0 %189, %v181
  %v191 = vpop.permute.xlu0 %190
  %v193 = vadd.f32 %v187, %v191
  %v194 = vmax.f32 %v193, 0.0
  %195 = vrot.lane.b32.xlu0 %v194, 1
  %v196 = vpop.permute.xlu0 %195
  %v197 = vsel %vm39, 1, 0
  %v198 = vlaneseq
  %v199 = vshrl.u32 %v198, 7
  %v200 = vsub.s32 0, %v199
  %v201 = vrot.slane %v197, %v200
  %vm202 = vcmp.eq.s32.totalorder %v201, 1
  %v203 = vsel %vm202, %v196, 0.0
  %vm204 = vcmp.le.s32.totalorder %v24, 14
  %205 = vrot.lane.b32.xlu0 %v194, 127
  %v206 = vpop.permute.xlu0 %205
  %v207 = vsel %vm204, 1, 0
  %v208 = vlaneseq
  %v209 = vshrl.u32 %v208, 7
  %v210 = vsub.s32 0, %v209
  %v211 = vrot.slane %v207, %v210
  %vm212 = vcmp.eq.s32.totalorder %v211, 1
  %v213 = vsel %vm212, %v206, 0.0
  %v214 = vmax.f32 %v203, %v194
  %v215 = vmax.f32 %v214, %v213
  %v216 = vlaneseq
  %v217 = vshrl.u32 %v216, 7
  %v218 = vadd.s32 %v217, 8
  %v219 = vadd.s32 %v217, 16
  %v220 = vadd.s32 %v217, 24
  %v221 = vadd.s32 %v217, 32
  %v222 = vadd.s32 %v217, 40
  %v223 = vadd.s32 %v217, 48
  %v224 = vadd.s32 %v217, 56
  %v225 = vadd.s32 %v217, 64
  %v226 = vadd.s32 %v217, 72
  %v227 = vadd.s32 %v217, 80
  %v228 = vadd.s32 %v217, 88
  %v229 = vadd.s32 %v217, 96
  %v230 = vadd.s32 %v217, 104
  %v231 = vadd.s32 %v217, 112
  %v232 = vadd.s32 %v217, 120
  %v233 = vld [vmem:[%s5] sm:$0x1]
  %v234 = vlaneseq
  %v235 = vshrl.u32 %v234, 7
  %v236 = vsub.s32 0, %v235
  %v237 = vrot.slane %v233, %v236
  %vm238 = vcmp.eq.s32.totalorder %v217, %v237
  %vm239 = vcmp.eq.s32.totalorder %v218, %v237
  %vm240 = vcmp.eq.s32.totalorder %v219, %v237
  %vm241 = vcmp.eq.s32.totalorder %v220, %v237
  %vm242 = vcmp.eq.s32.totalorder %v221, %v237
  %vm243 = vcmp.eq.s32.totalorder %v222, %v237
  %vm244 = vcmp.eq.s32.totalorder %v223, %v237
  %vm245 = vcmp.eq.s32.totalorder %v224, %v237
  %vm246 = vcmp.eq.s32.totalorder %v225, %v237
  %vm247 = vcmp.eq.s32.totalorder %v226, %v237
  %vm248 = vcmp.eq.s32.totalorder %v227, %v237
  %vm249 = vcmp.eq.s32.totalorder %v228, %v237
  %vm250 = vcmp.eq.s32.totalorder %v229, %v237
  %vm251 = vcmp.eq.s32.totalorder %v230, %v237
  %vm252 = vcmp.eq.s32.totalorder %v231, %v237
  %vm253 = vcmp.eq.s32.totalorder %v232, %v237
  %v254 = vsel %vm238, 1, 0
  %v255 = vsel %vm239, 1, 0
  %v256 = vsel %vm240, 1, 0
  %v257 = vsel %vm241, 1, 0
  %v258 = vsel %vm242, 1, 0
  %v259 = vsel %vm243, 1, 0
  %v260 = vsel %vm244, 1, 0
  %v261 = vsel %vm245, 1, 0
  %v262 = vsel %vm246, 1, 0
  %v263 = vsel %vm247, 1, 0
  %v264 = vsel %vm248, 1, 0
  %v265 = vsel %vm249, 1, 0
  %v266 = vsel %vm250, 1, 0
  %v267 = vsel %vm251, 1, 0
  %v268 = vsel %vm252, 1, 0
  %v269 = vsel %vm253, 1, 0
  %v270 = vcvt.s32.f32 %v254
  %v271 = vcvt.s32.f32 %v255
  %v272 = vcvt.s32.f32 %v256
  %v273 = vcvt.s32.f32 %v257
  %v274 = vcvt.s32.f32 %v258
  %v275 = vcvt.s32.f32 %v259
  %v276 = vcvt.s32.f32 %v260
  %v277 = vcvt.s32.f32 %v261
  %v278 = vcvt.s32.f32 %v262
  %v279 = vcvt.s32.f32 %v263
  %v280 = vcvt.s32.f32 %v264
  %v281 = vcvt.s32.f32 %v265
  %v282 = vcvt.s32.f32 %v266
  %v283 = vcvt.s32.f32 %v267
  %v284 = vcvt.s32.f32 %v268
  %v285 = vcvt.s32.f32 %v269
  %286 = vmatprep.subr.mxu0 0.0
  %287 = vmatpush1.msra.mxu0 %v285
  %288 = vmatprep.subr.mxu0 0.0
  %289 = vmatpush1.msra.mxu0 %v284
  %290 = vmatprep.subr.mxu0 0.0
  %291 = vmatpush1.msra.mxu0 %v283
  %292 = vmatprep.subr.mxu0 0.0
  %293 = vmatpush1.msra.mxu0 %v282
  %294 = vmatprep.subr.mxu0 0.0
  %295 = vmatpush1.msra.mxu0 %v281
  %296 = vmatprep.subr.mxu0 0.0
  %297 = vmatpush1.msra.mxu0 %v280
  %298 = vmatprep.subr.mxu0 0.0
  %299 = vmatpush1.msra.mxu0 %v279
  %300 = vmatprep.subr.mxu0 0.0
  %301 = vmatpush1.msra.mxu0 %v278
  %302 = vmatprep.subr.mxu0 0.0
  %303 = vmatpush1.msra.mxu0 %v277
  %304 = vmatprep.subr.mxu0 0.0
  %305 = vmatpush1.msra.mxu0 %v276
  %306 = vmatprep.subr.mxu0 0.0
  %307 = vmatpush1.msra.mxu0 %v275
  %308 = vmatprep.subr.mxu0 0.0
  %309 = vmatpush1.msra.mxu0 %v274
  %310 = vmatprep.subr.mxu0 0.0
  %311 = vmatpush1.msra.mxu0 %v273
  %312 = vmatprep.subr.mxu0 0.0
  %313 = vmatpush1.msra.mxu0 %v272
  %314 = vmatprep.subr.mxu0 0.0
  %315 = vmatpush1.msra.mxu0 %v271
  %316 = vmatprep.subr.mxu0 0.0
  %317 = vmatpush1.msra.mxu0 %v270
  %318 = vmatprep.subr.mxu0 0.0
  %319 = vmatpush2.msra.mxu0 0.0
  %320 = vmatprep.subr.mxu0 0.0
  %321 = vmatpush2.msra.mxu0 0.0
  %322 = vmatprep.subr.mxu0 0.0
  %323 = vmatpush2.msra.mxu0 0.0
  %324 = vmatprep.subr.mxu0 0.0
  %325 = vmatpush2.msra.mxu0 0.0
  %326 = vmatprep.subr.mxu0 0.0
  %327 = vmatpush2.msra.mxu0 0.0
  %328 = vmatprep.subr.mxu0 0.0
  %329 = vmatpush2.msra.mxu0 0.0
  %330 = vmatprep.subr.mxu0 0.0
  %331 = vmatpush2.msra.mxu0 0.0
  %332 = vmatprep.subr.mxu0 0.0
  %333 = vmatpush2.msra.mxu0 0.0
  %334 = vmatprep.subr.mxu0 0.0
  %335 = vmatpush2.msra.mxu0 0.0
  %336 = vmatprep.subr.mxu0 0.0
  %337 = vmatpush2.msra.mxu0 0.0
  %338 = vmatprep.subr.mxu0 0.0
  %339 = vmatpush2.msra.mxu0 0.0
  %340 = vmatprep.subr.mxu0 0.0
  %341 = vmatpush2.msra.mxu0 0.0
  %342 = vmatprep.subr.mxu0 0.0
  %343 = vmatpush2.msra.mxu0 0.0
  %344 = vmatprep.subr.mxu0 0.0
  %345 = vmatpush2.msra.mxu0 0.0
  %346 = vmatprep.subr.mxu0 0.0
  %347 = vmatpush2.msra.mxu0 0.0
  %348 = vmatprep.subr.mxu0 0.0
  %349 = vmatpush2.msra.mxu0 0.0
  %350 = vmatprep.mubr.f32.mxu0 0.0
  %351 = vmatmul.mubr.f32.gmra.mxu0 %v215
  %v352 = vpop.f32.mrf.mxu0
  %v353 = vadd.f32 0.0, %v352
  %v354 = vpop.f32.mrf.mxu0
  %355 = vdwg.mxu0
  %356 = vst [vmem:[%s6] sm:$0xff] %v353
  // Predicated region
  $region26: #{multiconv_forward.1} parent=0 // pred_check
    _
  $region27: #{multiconv_forward.1} parent=0 // pred_check_branch
    %358 = sbr.rel (0) target = $region29
  $region28: #{multiconv_forward.1} parent=0 // pred_region
    _
  $region29: #{multiconv_forward.1} parent=0 // pred_fallthru
    _
  // Predicated region
  $region30: #{multiconv_forward.1} parent=0 // pred_check
    _
  $region31: #{multiconv_forward.1} parent=0 // pred_check_branch
    %360 = sbr.rel (0) target = $region33
  $region32: #{multiconv_forward.1} parent=0 // pred_region
    _
  $region33: #{multiconv_forward.1} parent=0 // pred_fallthru
    _

</llo_original>
